<compile_context>
chip_gen: v5e
topology: v5e:2x2
jax: 0.10.0
libtpu: 0.0.40
codegen_flags: <defaults>
</compile_context>

<pallas_src>
from functools import partial

import jax
import jax.numpy as jnp
from jax import lax
from jax.experimental import pallas as pl
from jax.experimental.pallas import tpu as pltpu


def _round_up(v: int, m: int) -> int:
    return (v + m - 1) // m * m


def setter_scaled_linear_kernel(x_ref, w_ref, ss_ref, o_ref, acc_ref):
    """One (tm, tn) output tile, accumulated over the K grid axis.

    x_ref  : (tm, tk)   activations
    w_ref  : (tn, tk)   weight in native nn.Linear (out, in) layout
    ss_ref : (2,  tn)   row 0 = scale, row 1 = bias*scale + shift
    o_ref  : (tm, tn)   output tile
    acc_ref: (tm, tn)   f32 VMEM accumulator (persists across the K axis)
    """
    k = pl.program_id(2)

    @pl.when(k == 0)
    def _():
        acc_ref[...] = jnp.zeros_like(acc_ref)

    # Contract on K with the weight untransposed: MXU consumes the transposed
    # operand directly, no separate HBM transpose pass needed.
    acc_ref[...] += lax.dot_general(
        x_ref[...],
        w_ref[...],
        dimension_numbers=(((1,), (1,)), ((), ())),
        preferred_element_type=jnp.float32,
    )

    @pl.when(k == pl.num_programs(2) - 1)
    def _():
        scale = ss_ref[0:1, :]  # (1, tn)
        shift = ss_ref[1:2, :]  # (1, tn) == bias*scale + shift (pre-folded)
        o_ref[...] = (acc_ref[...] * scale + shift).astype(o_ref.dtype)


def setter_scaled_linear_pallas(
    x, weight, bias, scale, shift, *, tm=256, tn=256, tk=256, compute_dtype=None
):
    """(x @ weight.T + bias) * scale + shift, tiled Pallas implementation."""
    M, K = x.shape
    N, K2 = weight.shape
    assert K == K2, "weight must be (N, K) with K == x.shape[1]"

    # Fold the affine epilogue:  out = acc*scale + (bias*scale + shift)
    fused_shift = bias.astype(jnp.float32) * scale.astype(jnp.float32) + shift.astype(
        jnp.float32
    )
    ss = jnp.stack([scale.astype(jnp.float32), fused_shift], axis=0)  # (2, N)

    # Clamp tiles to the (padded) problem size; keep sublane/lane alignment.
    tm = min(tm, _round_up(M, 8))
    tn = min(tn, _round_up(N, 128))
    tk = min(tk, _round_up(K, 128))
    Mp, Np, Kp = _round_up(M, tm), _round_up(N, tn), _round_up(K, tk)

    x_p = jnp.pad(x, ((0, Mp - M), (0, Kp - K))) if (Mp, Kp) != (M, K) else x
    w_p = (
        jnp.pad(weight, ((0, Np - N), (0, Kp - K))) if (Np, Kp) != (N, K) else weight
    )
    ss_p = jnp.pad(ss, ((0, 0), (0, Np - N))) if Np != N else ss

    if compute_dtype is not None:  # e.g. jnp.bfloat16 on v6e/v7x; acc stays f32
        x_p = x_p.astype(compute_dtype)
        w_p = w_p.astype(compute_dtype)

    grid = (Mp // tm, Np // tn, Kp // tk)

    out = pl.pallas_call(
        setter_scaled_linear_kernel,
        out_shape=jax.ShapeDtypeStruct((Mp, Np), x.dtype),
        grid=grid,
        in_specs=[
            pl.BlockSpec((tm, tk), lambda i, j, k: (i, k)),  # x
            pl.BlockSpec((tn, tk), lambda i, j, k: (j, k)),  # weight (N, K)
            pl.BlockSpec((2, tn), lambda i, j, k: (0, j)),   # scale / fused shift
        ],
        out_specs=pl.BlockSpec((tm, tn), lambda i, j, k: (i, j)),
        scratch_shapes=[pltpu.VMEM((tm, tn), jnp.float32)],
        compiler_params=pltpu.CompilerParams(
            dimension_semantics=("parallel", "parallel", "arbitrary")
        ),
    )(x_p, w_p, ss_p)

    return out[:M, :N]


def setter_forward(x, weight, bias, scale, shift, *, min_mnk=0, compute_dtype=None):
    """Equivalent of Setter(ScaledLinear, ["scale","shift"]).forward(x, scale, shift).

    `scale` / `shift` are the trailing forward() args that Setter would assign
    as attributes of the wrapped module before calling it with `x`.
    """
    M, K = x.shape
    N = weight.shape[0]
    if M * N * K < min_mnk:
        # At tiny sizes the pallas_call fixed overhead dominates; let XLA fuse.
        return (x @ weight.T + bias[None, :]) * scale[None, :] + shift[None, :]
    return setter_scaled_linear_pallas(
        x, weight, bias, scale, shift, compute_dtype=compute_dtype
    )


if __name__ == "__main__":
    # Small shapes: batch=2, seq=8 -> M=16 rows, hidden K=32 -> out N=32.
    B, S, K, N = 2, 8, 32, 32
    M = B * S

    key = jax.random.PRNGKey(0)
    kx, kw, kb, ks, kh = jax.random.split(key, 5)

    x = jax.random.normal(kx, (M, K), dtype=jnp.float32)
    weight = jax.random.normal(kw, (N, K), dtype=jnp.float32) * 0.1  # nn.Linear (out, in)
    bias = jax.random.normal(kb, (N,), dtype=jnp.float32) * 0.1
    # trailing forward() args consumed by Setter and set as module members:
    scale = jax.random.normal(ks, (N,), dtype=jnp.float32)
    shift = jax.random.normal(kh, (N,), dtype=jnp.float32)

    # min_mnk=0 forces the Pallas path even at this toy size (demo purposes).
    out = setter_forward(x, weight, bias, scale, shift, min_mnk=0)
    out = jax.block_until_ready(out)

    # reference check (plain JAX)
    ref = (x @ weight.T + bias[None, :]) * scale[None, :] + shift[None, :]
    assert out.shape == (M, N)
    assert jnp.allclose(out, ref, atol=1e-4, rtol=1e-4)

    print("KERNEL_OK")
</pallas_src>

<mosaic_0001>
module attributes {stable_mosaic.version = 11 : i64} {
  func.func @setter_scaled_linear_kernel(%arg0: i32, %arg1: i32, %arg2: i32, %arg3: memref<16x128xf32, #tpu.memory_space<vmem>>, %arg4: memref<128x128xf32, #tpu.memory_space<vmem>>, %arg5: memref<2x128xf32, #tpu.memory_space<vmem>>, %arg6: memref<16x128xf32, #tpu.memory_space<vmem>>, %arg7: memref<16x128xf32, #tpu.memory_space<vmem>>) attributes {dimension_semantics = [#tpu.dimension_semantics<parallel>, #tpu.dimension_semantics<parallel>, #tpu.dimension_semantics<arbitrary>], iteration_bounds = array<i64: 1, 1, 1>, scalar_prefetch = 0 : i64, scratch_operands = 1 : i64, tpu.core_type = #tpu.core_type<tc>, window_params = [{transform_indices = @transform_0, window_bounds = array<i64: 16, 128>}, {transform_indices = @transform_1, window_bounds = array<i64: 128, 128>}, {transform_indices = @transform_2, window_bounds = array<i64: 2, 128>}, {transform_indices = @transform_3, window_bounds = array<i64: 16, 128>}]} {
    %c0_i32 = arith.constant 0 : i32
    %0 = arith.cmpi eq, %arg2, %c0_i32 : i32
    %1 = arith.extui %0 : i1 to i32
    %c0_i32_0 = arith.constant 0 : i32
    %2 = arith.cmpi ne, %1, %c0_i32_0 : i32
    scf.if %2 {
      %cst_10 = arith.constant 0.000000e+00 : f32
      %12 = vector.broadcast %cst_10 : f32 to vector<16x128xf32>
      %c0_11 = arith.constant 0 : index
      %c0_12 = arith.constant 0 : index
      %13 = vector.load %arg7[%c0_11, %c0_12] : memref<16x128xf32, #tpu.memory_space<vmem>>, vector<16x128xf32>
      tpu.vector_store %arg7[%c0_11, %c0_12], %12 {strides = array<i32>} : memref<16x128xf32, #tpu.memory_space<vmem>>, vector<16x128xf32>,
    } else {
    }
    %c0 = arith.constant 0 : index
    %c0_1 = arith.constant 0 : index
    %3 = vector.load %arg7[%c0, %c0_1] : memref<16x128xf32, #tpu.memory_space<vmem>>, vector<16x128xf32>
    %c0_2 = arith.constant 0 : index
    %c0_3 = arith.constant 0 : index
    %4 = vector.load %arg3[%c0_2, %c0_3] : memref<16x128xf32, #tpu.memory_space<vmem>>, vector<16x128xf32>
    %c0_4 = arith.constant 0 : index
    %c0_5 = arith.constant 0 : index
    %5 = vector.load %arg4[%c0_4, %c0_5] : memref<128x128xf32, #tpu.memory_space<vmem>>, vector<128x128xf32>
    %cst = arith.constant dense<0.000000e+00> : vector<16x128xf32>
    %6 = tpu.matmul %4, %5, %cst {dimension_numbers = #tpu.dot_dimension_numbers<[1], [1], [0], [0], [0, 0, 1, 0], [], []>} : vector<16x128xf32>, vector<128x128xf32>, vector<16x128xf32> -> vector<16x128xf32>
    %7 = arith.addf %3, %6 : vector<16x128xf32>
    %c0_6 = arith.constant 0 : index
    %c0_7 = arith.constant 0 : index
    %8 = vector.load %arg7[%c0_6, %c0_7] : memref<16x128xf32, #tpu.memory_space<vmem>>, vector<16x128xf32>
    tpu.vector_store %arg7[%c0_6, %c0_7], %7 {strides = array<i32>} : memref<16x128xf32, #tpu.memory_space<vmem>>, vector<16x128xf32>,
    %c0_i32_8 = arith.constant 0 : i32
    %9 = arith.cmpi eq, %arg2, %c0_i32_8 : i32
    %10 = arith.extui %9 : i1 to i32
    %c0_i32_9 = arith.constant 0 : i32
    %11 = arith.cmpi ne, %10, %c0_i32_9 : i32
    scf.if %11 {
      %c0_10 = arith.constant 0 : index
      %c0_11 = arith.constant 0 : index
      %12 = vector.load %arg5[%c0_10, %c0_11] : memref<2x128xf32, #tpu.memory_space<vmem>>, vector<1x128xf32>
      %c1 = arith.constant 1 : index
      %c0_12 = arith.constant 0 : index
      %13 = vector.load %arg5[%c1, %c0_12] : memref<2x128xf32, #tpu.memory_space<vmem>>, vector<1x128xf32>
      %c0_13 = arith.constant 0 : index
      %c0_14 = arith.constant 0 : index
      %14 = vector.load %arg7[%c0_13, %c0_14] : memref<16x128xf32, #tpu.memory_space<vmem>>, vector<16x128xf32>
      %15 = vector.broadcast %12 : vector<1x128xf32> to vector<16x128xf32>
      %16 = arith.mulf %14, %15 : vector<16x128xf32>
      %17 = vector.broadcast %13 : vector<1x128xf32> to vector<16x128xf32>
      %18 = arith.addf %16, %17 : vector<16x128xf32>
      %c0_15 = arith.constant 0 : index
      %c0_16 = arith.constant 0 : index
      %19 = vector.load %arg6[%c0_15, %c0_16] : memref<16x128xf32, #tpu.memory_space<vmem>>, vector<16x128xf32>
      tpu.vector_store %arg6[%c0_15, %c0_16], %18 {strides = array<i32>} : memref<16x128xf32, #tpu.memory_space<vmem>>, vector<16x128xf32>,
    } else {
    }
    return
  }
  func.func @transform_0(%arg0: i32, %arg1: i32, %arg2: i32) -> (i32, i32) {
    %c0_i32 = arith.constant 0 : i32
    return %arg0, %arg2 : i32, i32
  }
  func.func @transform_1(%arg0: i32, %arg1: i32, %arg2: i32) -> (i32, i32) {
    %c0_i32 = arith.constant 0 : i32
    return %arg1, %arg2 : i32, i32
  }
  func.func @transform_2(%arg0: i32, %arg1: i32, %arg2: i32) -> (i32, i32) {
    %c0_i32 = arith.constant 0 : i32
    %c0_i32_0 = arith.constant 0 : i32
    return %c0_i32, %arg1 : i32, i32
  }
  func.func @transform_3(%arg0: i32, %arg1: i32, %arg2: i32) -> (i32, i32) {
    %c0_i32 = arith.constant 0 : i32
    return %arg0, %arg1 : i32, i32
  }
}

</mosaic_0001>

<llo_original>
// kernel: tpu_custom_call.1
$region0: #{tpu_custom_call.1}
  #allocation0 [shape = 'u32[]', space=smem, size = 0x4, offset = 0x4, fixed_abs, tag = 'smem constant byte address 0x4 - core index']
  #allocation1 [shape = 'u32[72,128]{1,0:T(1,128)}', space=vmem, size = 0x9000, scoped, tag = 'internal scratch']
  #allocation2 [shape = 'f32[16,128]{1,0:T(8,128)}', space=vmem, size = 0x2000, scoped, tag = 'scratch operand']
  %s0 = inlined_call_operand.hbm [shape: f32[16,128], index: 0, kind: input, shape index: {}]
  %s1 = inlined_call_operand.hbm [shape: f32[128,128], index: 1, kind: input, shape index: {}]
  %s2 = inlined_call_operand.hbm [shape: f32[2,128], index: 2, kind: input, shape index: {}]
  %s3 = inlined_call_operand.hbm [shape: f32[16,128], index: 3, kind: output, shape index: {}]
  %s4 = sld [smem:[#allocation0]]
  $region42: #{tpu_custom_call.1} parent=0
    _
  %s6 = ssub.s32 1, %s4
  %s7 = scalar_select 0, %s6, %s4
  $region1: #{tpu_custom_call.1} parent=0
    #allocation3 [shape = 'u8[8192]{0}', space=vmem, size = 0x2000, scoped, tag = 'input window, operand 0, single buffered']
    #allocation4 [shape = 's32[1]{0}', space=sflag, size = 0x4, scoped, tag = 'scoped memory for tpu_custom_call.1']
    #allocation5 [shape = 's32[1]{0}', space=sflag, size = 0x4, scoped, tag = 'scoped memory for tpu_custom_call.1']
    #allocation6 [shape = 'u8[65536]{0}', space=vmem, size = 0x10000, scoped, tag = 'input window, operand 1, single buffered']
    #allocation7 [shape = 's32[1]{0}', space=sflag, size = 0x4, scoped, tag = 'scoped memory for tpu_custom_call.1']
    #allocation8 [shape = 'u8[1024]{0}', space=vmem, size = 0x400, scoped, tag = 'input window, operand 2, single buffered']
    #allocation9 [shape = 'u8[8192]{0}', space=vmem, size = 0x2000, scoped, tag = 'output window, operand 0, single buffered']
    %8 = vsyncpa [#allocation4], 0
    %9 = vsyncpa [#allocation7], 0
    %10 = vsyncpa [#allocation5], 0
    // Predicated region
    $region2: #{tpu_custom_call.1} parent=1 // pred_check
      _
    $region3: #{tpu_custom_call.1} parent=1 // pred_check_branch
      %12 = sbr.rel (0) target = $region5
    $region4: #{tpu_custom_call.1} parent=1 // pred_region
      %14 = vsyncadd [#allocation4], 0
      %s15 = sshll.u32 %s0, 4
      %s16 = int_to_ptr.hbm [resolvable:$true] %s15
      %s17 = sshll.u32 [#allocation3], 4
      %s18 = int_to_ptr.vmem [resolvable:$true] %s17
      %23 = dma.hbm_to_vmem [thread:$0]  %s16, 256, %s18, [#allocation4], 128, 128, 8
    $region5: #{tpu_custom_call.1} parent=1 // pred_fallthru
      _
    // Predicated region
    $region6: #{tpu_custom_call.1} parent=1 // pred_check
      _
    $region7: #{tpu_custom_call.1} parent=1 // pred_check_branch
      %25 = sbr.rel (0) target = $region9
    $region8: #{tpu_custom_call.1} parent=1 // pred_region
      %27 = vsyncadd [#allocation7], 0
      %s28 = sshll.u32 %s1, 4
      %s29 = int_to_ptr.hbm [resolvable:$true] %s28
      %s30 = sshll.u32 [#allocation6], 4
      %s31 = int_to_ptr.vmem [resolvable:$true] %s30
      %36 = dma.hbm_to_vmem [thread:$0]  %s29, 2048, %s31, [#allocation7], 128, 128, 8
    $region9: #{tpu_custom_call.1} parent=1 // pred_fallthru
      _
    // Predicated region
    $region10: #{tpu_custom_call.1} parent=1 // pred_check
      _
    $region11: #{tpu_custom_call.1} parent=1 // pred_check_branch
      %38 = sbr.rel (0) target = $region13
    $region12: #{tpu_custom_call.1} parent=1 // pred_region
      %40 = vsyncadd [#allocation7], 0
      %s42 = sshll.u32 %s2, 4
      %s43 = int_to_ptr.hbm [resolvable:$true] %s42
      %s44 = sshll.u32 [#allocation8], 4
      %s45 = int_to_ptr.vmem [resolvable:$true] %s44
      %47 = dma.hbm_to_vmem [thread:$0]  %s43, 32, %s45, [#allocation7]
    $region13: #{tpu_custom_call.1} parent=1 // pred_fallthru
      _
    // Predicated region
    $region14: #{tpu_custom_call.1} parent=1 // pred_check
      _
    $region15: #{tpu_custom_call.1} parent=1 // pred_check_branch
      %49 = sbr.rel (0) target = $region17
    $region16: #{tpu_custom_call.1} parent=1 // pred_region
      %51 = dma.done [#allocation4], 256
    $region17: #{tpu_custom_call.1} parent=1 // pred_fallthru
      _
    // Predicated region
    $region18: #{tpu_custom_call.1} parent=1 // pred_check
      _
    $region19: #{tpu_custom_call.1} parent=1 // pred_check_branch
      %53 = sbr.rel (0) target = $region21
    $region20: #{tpu_custom_call.1} parent=1 // pred_region
      %55 = dma.done [#allocation7], 2048
    $region21: #{tpu_custom_call.1} parent=1 // pred_fallthru
      _
    // Predicated region
    $region22: #{tpu_custom_call.1} parent=1 // pred_check
      _
    $region23: #{tpu_custom_call.1} parent=1 // pred_check_branch
      %57 = sbr.rel (0) target = $region25
    $region24: #{tpu_custom_call.1} parent=1 // pred_region
      %59 = dma.done [#allocation7], 32
    $region25: #{tpu_custom_call.1} parent=1 // pred_fallthru
      _
    %p60 = scmp.eq.s32.totalorder 0, 0
    // Predicated region
    $region26: #{tpu_custom_call.1} parent=1 // pred_check
      %p61 = pneg %p60
    $region27: #{tpu_custom_call.1} parent=1 // pred_check_branch
      %63 = sbr.rel (%p61) target = $region29
    $region28: #{tpu_custom_call.1} parent=1 // pred_region
      %64 = vst [vmem:[#allocation2] sm:$0xff] 0.0
      %65 = vst [vmem:[#allocation2 + $0x8] sm:$0xff] 0.0
    $region29: #{tpu_custom_call.1} parent=1 // pred_fallthru
      _
    %v66 = vld [vmem:[#allocation2] sm:$0xff]
    %v67 = vld [vmem:[#allocation2 + $0x8] sm:$0xff]
    %v68 = vld [vmem:[#allocation3] sm:$0xff]
    %v69 = vld [vmem:[#allocation3 + $0x8] sm:$0xff]
    %v70 = vld [vmem:[#allocation6] sm:$0xff]
    %v71 = vld [vmem:[#allocation6 + $0x8] sm:$0xff]
    %v72 = vld [vmem:[#allocation6 + $0x10] sm:$0xff]
    %v73 = vld [vmem:[#allocation6 + $0x18] sm:$0xff]
    %v74 = vld [vmem:[#allocation6 + $0x20] sm:$0xff]
    %v75 = vld [vmem:[#allocation6 + $0x28] sm:$0xff]
    %v76 = vld [vmem:[#allocation6 + $0x30] sm:$0xff]
    %v77 = vld [vmem:[#allocation6 + $0x38] sm:$0xff]
    %v78 = vld [vmem:[#allocation6 + $0x40] sm:$0xff]
    %v79 = vld [vmem:[#allocation6 + $0x48] sm:$0xff]
    %v80 = vld [vmem:[#allocation6 + $0x50] sm:$0xff]
    %v81 = vld [vmem:[#allocation6 + $0x58] sm:$0xff]
    %v82 = vld [vmem:[#allocation6 + $0x60] sm:$0xff]
    %v83 = vld [vmem:[#allocation6 + $0x68] sm:$0xff]
    %v84 = vld [vmem:[#allocation6 + $0x70] sm:$0xff]
    %v85 = vld [vmem:[#allocation6 + $0x78] sm:$0xff]
    %86 = vmatpush.xpose.msra.mxu0 %v85
    %87 = vmatpush.xpose.msra.mxu0 %v84
    %88 = vmatpush.xpose.msra.mxu0 %v83
    %89 = vmatpush.xpose.msra.mxu0 %v82
    %90 = vmatpush.xpose.msra.mxu0 %v81
    %91 = vmatpush.xpose.msra.mxu0 %v80
    %92 = vmatpush.xpose.msra.mxu0 %v79
    %93 = vmatpush.xpose.msra.mxu0 %v78
    %94 = vmatpush.xpose.msra.mxu0 %v77
    %95 = vmatpush.xpose.msra.mxu0 %v76
    %96 = vmatpush.xpose.msra.mxu0 %v75
    %97 = vmatpush.xpose.msra.mxu0 %v74
    %98 = vmatpush.xpose.msra.mxu0 %v73
    %99 = vmatpush.xpose.msra.mxu0 %v72
    %100 = vmatpush.xpose.msra.mxu0 %v71
    %101 = vmatpush.xpose.msra.mxu0 %v70
    %102 = vmatmul.f32.gmra.mxu0 %v68
    %v103 = vpop.f32.mrf.mxu0
    %v104 = vadd.f32 0.0, %v103
    %105 = vmatmul.f32.gmra.mxu0 %v69
    %v106 = vpop.f32.mrf.mxu0
    %v107 = vadd.f32 0.0, %v106
    %108 = vdwg.mxu0
    %v109 = vadd.f32 %v66, %v104
    %v110 = vadd.f32 %v67, %v107
    %111 = vst [vmem:[#allocation2] sm:$0xff] %v109
    %112 = vst [vmem:[#allocation2 + $0x8] sm:$0xff] %v110
    // Predicated region
    $region30: #{tpu_custom_call.1} parent=1 // pred_check
      %p113 = pneg %p60
    $region31: #{tpu_custom_call.1} parent=1 // pred_check_branch
      %115 = sbr.rel (%p113) target = $region33
    $region32: #{tpu_custom_call.1} parent=1 // pred_region
      %v116 = vld [vmem:[#allocation8] sm:$0x1]
      %v117 = vld [vmem:[#allocation8 + $0x1] sm:$0x1]
      %v118 = vld [vmem:[#allocation2] sm:$0xff]
      %v119 = vld [vmem:[#allocation2 + $0x8] sm:$0xff]
      %v120 = vperm.slane %v116, 0
      %v121 = vmul.f32 %v118, %v120
      %v122 = vmul.f32 %v119, %v120
      %v123 = vperm.slane %v117, 0
      %v124 = vadd.f32 %v121, %v123
      %v125 = vadd.f32 %v122, %v123
      %126 = vst [vmem:[#allocation9] sm:$0xff] %v124
      %127 = vst [vmem:[#allocation9 + $0x8] sm:$0xff] %v125
    $region33: #{tpu_custom_call.1} parent=1 // pred_fallthru
      _
    // Predicated region
    $region34: #{tpu_custom_call.1} parent=1 // pred_check
      _
    $region35: #{tpu_custom_call.1} parent=1 // pred_check_branch
      %129 = sbr.rel (0) target = $region37
    $region36: #{tpu_custom_call.1} parent=1 // pred_region
      %131 = vsyncadd [#allocation5], 0
      %s132 = sshll.u32 [#allocation9], 4
      %s133 = int_to_ptr.vmem [resolvable:$true] %s132
      %s134 = sshll.u32 %s3, 4
      %s135 = int_to_ptr.hbm [resolvable:$true] %s134
      %140 = dma.vmem_to_hbm [thread:$0]  %s133, 256, %s135, [#allocation5], 128, 128, 8
    $region37: #{tpu_custom_call.1} parent=1 // pred_fallthru
      _
    // Predicated region
    $region38: #{tpu_custom_call.1} parent=1 // pred_check
      _
    $region39: #{tpu_custom_call.1} parent=1 // pred_check_branch
      %142 = sbr.rel (0) target = $region41
    $region40: #{tpu_custom_call.1} parent=1 // pred_region
      %144 = dma.done [#allocation5], 256
    $region41: #{tpu_custom_call.1} parent=1 // pred_fallthru
      _
    %145 = vsyncpa [#allocation4], 1
    %146 = vsyncpa [#allocation7], 1
    %147 = vsyncpa [#allocation5], 1

</llo_original>
